<compile_context>
chip_gen: v5e
topology: v5e:2x2
jax: 0.10.0
libtpu: 0.0.40
codegen_flags: <defaults>
</compile_context>

<pallas_src>
import jax
import jax.numpy as jnp
from jax import lax
from jax.experimental import pallas as pl
from jax.experimental.pallas import tpu as pltpu


def _round_up(x, m):
    return ((x + m - 1) // m) * m


def _mean_vfe_kernel(feat_ref, npts_ref, out_ref):
    # feat_ref: (P, C, TILE_V)  -- V on lanes (dense), C on sublanes, P leading
    # npts_ref: (1, TILE_V)     -- lane-dense row of point counts
    # out_ref : (C, TILE_V)     -- lane-dense output tile
    P = feat_ref.shape[0]

    # Incremental f32 accumulation over the leading P axis (pure VPU adds);
    # avoids materializing a full upcast (P, C, TILE_V) block for bf16 inputs.
    acc0 = feat_ref[0].astype(jnp.float32)                      # (C, TILE_V)

    def body(p, acc):
        return acc + feat_ref[p].astype(jnp.float32)

    acc = lax.fori_loop(1, P, body, acc0, unroll=True)

    denom = jnp.maximum(npts_ref[...].astype(jnp.float32), 1.0)  # (1, TILE_V)
    inv = 1.0 / denom                                            # one row of divides
    # (1, TILE_V) broadcasts along sublanes against (C, TILE_V) for free.
    out_ref[...] = (acc * inv).astype(out_ref.dtype)


def mean_voxel_feature_extractor(voxel_features, voxel_num_points, *, tile_v=1024):
    """voxel_features: (V, P, C); voxel_num_points: (V,) -> (V, C) mean features."""
    V, P, C = voxel_features.shape
    out_dtype = voxel_features.dtype

    # Pick the largest lane-aligned tile that is useful for this V; pad V up to
    # a multiple of it (no divisibility assert -> ragged V handled by padding).
    tile_v = max(128, min(int(tile_v), _round_up(V, 128)))
    v_pad = _round_up(V, tile_v)

    # Lane-dense layout: (V, P, C) -> (P, C, V); counts as a (1, V) row.
    feats = jnp.transpose(voxel_features, (1, 2, 0))             # (P, C, V)
    npts = voxel_num_points.astype(jnp.float32).reshape(1, V)    # (1, V)
    if v_pad != V:
        feats = jnp.pad(feats, ((0, 0), (0, 0), (0, v_pad - V)))
        npts = jnp.pad(npts, ((0, 0), (0, v_pad - V)))

    grid = (v_pad // tile_v,)

    out_cv = pl.pallas_call(
        _mean_vfe_kernel,
        out_shape=jax.ShapeDtypeStruct((C, v_pad), out_dtype),
        grid_spec=pl.GridSpec(
            grid=grid,
            in_specs=[
                pl.BlockSpec((P, C, tile_v), lambda i: (0, 0, i)),
                pl.BlockSpec((1, tile_v), lambda i: (0, i)),
            ],
            out_specs=pl.BlockSpec((C, tile_v), lambda i: (0, i)),
        ),
        compiler_params=pltpu.CompilerParams(
            dimension_semantics=("parallel",),   # lets v7x shard steps over 2 TCs
        ),
    )(feats, npts)

    # Back to channels-last (V, C), dropping the V padding.
    return jnp.transpose(out_cv[:, :V], (1, 0))


if __name__ == "__main__":
    key = jax.random.PRNGKey(0)
    k1, k2 = jax.random.split(key)

    V, P, C = 64, 8, 4  # voxels, max points per voxel, point feature dim (x,y,z,r)

    voxel_features = jax.random.normal(k1, (V, P, C), dtype=jnp.float32)
    voxel_num_points = jax.random.randint(k2, (V,), 0, P + 1).astype(jnp.int32)

    # Zero out padded points (standard VFE convention) so the sum is exact.
    point_idx = jnp.arange(P)[None, :, None]                      # (1, P, 1)
    valid = (point_idx < voxel_num_points[:, None, None]).astype(jnp.float32)
    voxel_features = voxel_features * valid

    out = mean_voxel_feature_extractor(voxel_features, voxel_num_points)
    out = jax.block_until_ready(out)

    # Reference (plain JAX) check of the same semantics.
    ref = voxel_features.sum(axis=1) / jnp.maximum(
        voxel_num_points.astype(jnp.float32), 1.0
    )[:, None]
    assert out.shape == (V, C)
    assert jnp.allclose(out, ref, atol=1e-5, rtol=1e-5)

    print("KERNEL_OK")
</pallas_src>

<mosaic_0001>
module attributes {stable_mosaic.version = 11 : i64} {
  func.func @_mean_vfe_kernel(%arg0: i32, %arg1: memref<8x4x128xf32, #tpu.memory_space<vmem>>, %arg2: memref<1x128xf32, #tpu.memory_space<vmem>>, %arg3: memref<4x128xf32, #tpu.memory_space<vmem>>) attributes {dimension_semantics = [#tpu.dimension_semantics<parallel>], iteration_bounds = array<i64: 1>, scalar_prefetch = 0 : i64, scratch_operands = 0 : i64, tpu.core_type = #tpu.core_type<tc>, window_params = [{transform_indices = @transform_0, window_bounds = array<i64: 8, 4, 128>}, {transform_indices = @transform_1, window_bounds = array<i64: 1, 128>}, {transform_indices = @transform_2, window_bounds = array<i64: 4, 128>}]} {
    %c0 = arith.constant 0 : index
    %c0_0 = arith.constant 0 : index
    %c0_1 = arith.constant 0 : index
    %0 = vector.load %arg1[%c0, %c0_0, %c0_1] : memref<8x4x128xf32, #tpu.memory_space<vmem>>, vector<1x4x128xf32>
    %1 = vector.shape_cast %0 : vector<1x4x128xf32> to vector<4x128xf32>
    %c1_i32 = arith.constant 1 : i32
    %2 = arith.index_cast %c1_i32 : i32 to index
    %c0_2 = arith.constant 0 : index
    %c0_3 = arith.constant 0 : index
    %3 = vector.load %arg1[%2, %c0_2, %c0_3] : memref<8x4x128xf32, #tpu.memory_space<vmem>>, vector<1x4x128xf32>
    %4 = vector.shape_cast %3 : vector<1x4x128xf32> to vector<4x128xf32>
    %5 = arith.addf %1, %4 : vector<4x128xf32>
    %c2_i32 = arith.constant 2 : i32
    %6 = arith.index_cast %c2_i32 : i32 to index
    %c0_4 = arith.constant 0 : index
    %c0_5 = arith.constant 0 : index
    %7 = vector.load %arg1[%6, %c0_4, %c0_5] : memref<8x4x128xf32, #tpu.memory_space<vmem>>, vector<1x4x128xf32>
    %8 = vector.shape_cast %7 : vector<1x4x128xf32> to vector<4x128xf32>
    %9 = arith.addf %5, %8 : vector<4x128xf32>
    %c3_i32 = arith.constant 3 : i32
    %10 = arith.index_cast %c3_i32 : i32 to index
    %c0_6 = arith.constant 0 : index
    %c0_7 = arith.constant 0 : index
    %11 = vector.load %arg1[%10, %c0_6, %c0_7] : memref<8x4x128xf32, #tpu.memory_space<vmem>>, vector<1x4x128xf32>
    %12 = vector.shape_cast %11 : vector<1x4x128xf32> to vector<4x128xf32>
    %13 = arith.addf %9, %12 : vector<4x128xf32>
    %c4_i32 = arith.constant 4 : i32
    %14 = arith.index_cast %c4_i32 : i32 to index
    %c0_8 = arith.constant 0 : index
    %c0_9 = arith.constant 0 : index
    %15 = vector.load %arg1[%14, %c0_8, %c0_9] : memref<8x4x128xf32, #tpu.memory_space<vmem>>, vector<1x4x128xf32>
    %16 = vector.shape_cast %15 : vector<1x4x128xf32> to vector<4x128xf32>
    %17 = arith.addf %13, %16 : vector<4x128xf32>
    %c5_i32 = arith.constant 5 : i32
    %18 = arith.index_cast %c5_i32 : i32 to index
    %c0_10 = arith.constant 0 : index
    %c0_11 = arith.constant 0 : index
    %19 = vector.load %arg1[%18, %c0_10, %c0_11] : memref<8x4x128xf32, #tpu.memory_space<vmem>>, vector<1x4x128xf32>
    %20 = vector.shape_cast %19 : vector<1x4x128xf32> to vector<4x128xf32>
    %21 = arith.addf %17, %20 : vector<4x128xf32>
    %c6_i32 = arith.constant 6 : i32
    %22 = arith.index_cast %c6_i32 : i32 to index
    %c0_12 = arith.constant 0 : index
    %c0_13 = arith.constant 0 : index
    %23 = vector.load %arg1[%22, %c0_12, %c0_13] : memref<8x4x128xf32, #tpu.memory_space<vmem>>, vector<1x4x128xf32>
    %24 = vector.shape_cast %23 : vector<1x4x128xf32> to vector<4x128xf32>
    %25 = arith.addf %21, %24 : vector<4x128xf32>
    %c7_i32 = arith.constant 7 : i32
    %26 = arith.index_cast %c7_i32 : i32 to index
    %c0_14 = arith.constant 0 : index
    %c0_15 = arith.constant 0 : index
    %27 = vector.load %arg1[%26, %c0_14, %c0_15] : memref<8x4x128xf32, #tpu.memory_space<vmem>>, vector<1x4x128xf32>
    %28 = vector.shape_cast %27 : vector<1x4x128xf32> to vector<4x128xf32>
    %29 = arith.addf %25, %28 : vector<4x128xf32>
    %c7_i32_16 = arith.constant 7 : i32
    %c0_17 = arith.constant 0 : index
    %c0_18 = arith.constant 0 : index
    %30 = vector.load %arg2[%c0_17, %c0_18] : memref<1x128xf32, #tpu.memory_space<vmem>>, vector<1x128xf32>
    %cst = arith.constant 1.000000e+00 : f32
    %31 = vector.broadcast %cst : f32 to vector<1x128xf32>
    %32 = arith.maximumf %30, %31 : vector<1x128xf32>
    %cst_19 = arith.constant 1.000000e+00 : f32
    %33 = vector.broadcast %cst_19 : f32 to vector<1x128xf32>
    %34 = arith.divf %33, %32 : vector<1x128xf32>
    %35 = vector.broadcast %34 : vector<1x128xf32> to vector<4x128xf32>
    %36 = arith.mulf %29, %35 : vector<4x128xf32>
    %c0_20 = arith.constant 0 : index
    %c0_21 = arith.constant 0 : index
    %37 = vector.load %arg3[%c0_20, %c0_21] : memref<4x128xf32, #tpu.memory_space<vmem>>, vector<4x128xf32>
    tpu.vector_store %arg3[%c0_20, %c0_21], %36 {strides = array<i32>} : memref<4x128xf32, #tpu.memory_space<vmem>>, vector<4x128xf32>,
    return
  }
  func.func @transform_0(%arg0: i32) -> (i32, i32, i32) {
    %c0_i32 = arith.constant 0 : i32
    %c0_i32_0 = arith.constant 0 : i32
    %c0_i32_1 = arith.constant 0 : i32
    return %c0_i32, %c0_i32_0, %arg0 : i32, i32, i32
  }
  func.func @transform_1(%arg0: i32) -> (i32, i32) {
    %c0_i32 = arith.constant 0 : i32
    %c0_i32_0 = arith.constant 0 : i32
    return %c0_i32, %arg0 : i32, i32
  }
  func.func @transform_2(%arg0: i32) -> (i32, i32) {
    %c0_i32 = arith.constant 0 : i32
    %c0_i32_0 = arith.constant 0 : i32
    return %c0_i32, %arg0 : i32, i32
  }
}

</mosaic_0001>

<llo_original>
// kernel: tpu_custom_call.1
$region0: #{tpu_custom_call.1}
  #allocation0 [shape = 'u32[]', space=smem, size = 0x4, offset = 0x4, fixed_abs, tag = 'smem constant byte address 0x4 - core index']
  #allocation1 [shape = 'u32[72,128]{1,0:T(1,128)}', space=vmem, size = 0x9000, scoped, tag = 'internal scratch']
  %s0 = inlined_call_operand.hbm [shape: f32[8,4,128], index: 0, kind: input, shape index: {}]
  %s1 = inlined_call_operand.hbm [shape: f32[1,128], index: 1, kind: input, shape index: {}]
  %s2 = inlined_call_operand.hbm [shape: f32[4,128], index: 2, kind: output, shape index: {}]
  %s3 = sld [smem:[#allocation0]]
  $region26: #{tpu_custom_call.1} parent=0
    _
  %s5 = ssub.s32 1, %s3
  %s6 = scalar_select 0, %s5, %s3
  $region1: #{tpu_custom_call.1} parent=0
    #allocation2 [shape = 'u8[16384]{0}', space=vmem, size = 0x4000, scoped, tag = 'input window, operand 0, single buffered']
    #allocation3 [shape = 's32[1]{0}', space=sflag, size = 0x4, scoped, tag = 'scoped memory for tpu_custom_call.1']
    #allocation4 [shape = 's32[1]{0}', space=sflag, size = 0x4, scoped, tag = 'scoped memory for tpu_custom_call.1']
    #allocation5 [shape = 'u8[512]{0}', space=vmem, size = 0x400, scoped, tag = 'input window, operand 1, single buffered']
    #allocation6 [shape = 's32[1]{0}', space=sflag, size = 0x4, scoped, tag = 'scoped memory for tpu_custom_call.1']
    #allocation7 [shape = 'u8[2048]{0}', space=vmem, size = 0x800, scoped, tag = 'output window, operand 0, single buffered']
    %7 = vsyncpa [#allocation3], 0
    %8 = vsyncpa [#allocation6], 0
    %9 = vsyncpa [#allocation4], 0
    // Predicated region
    $region2: #{tpu_custom_call.1} parent=1 // pred_check
      _
    $region3: #{tpu_custom_call.1} parent=1 // pred_check_branch
      %11 = sbr.rel (0) target = $region5
    $region4: #{tpu_custom_call.1} parent=1 // pred_region
      %13 = vsyncadd [#allocation3], 0
      %s14 = sshll.u32 %s0, 4
      %s15 = int_to_ptr.hbm [resolvable:$true] %s14
      %s16 = sshll.u32 [#allocation2], 4
      %s17 = int_to_ptr.vmem [resolvable:$true] %s16
      %22 = dma.hbm_to_vmem [thread:$0]  %s15, 512, %s17, [#allocation3], 64, 64, 4
    $region5: #{tpu_custom_call.1} parent=1 // pred_fallthru
      _
    // Predicated region
    $region6: #{tpu_custom_call.1} parent=1 // pred_check
      _
    $region7: #{tpu_custom_call.1} parent=1 // pred_check_branch
      %24 = sbr.rel (0) target = $region9
    $region8: #{tpu_custom_call.1} parent=1 // pred_region
      %26 = vsyncadd [#allocation6], 0
      %s28 = sshll.u32 %s1, 4
      %s29 = int_to_ptr.hbm [resolvable:$true] %s28
      %s30 = sshll.u32 [#allocation5], 4
      %s31 = int_to_ptr.vmem [resolvable:$true] %s30
      %33 = dma.hbm_to_vmem [thread:$0]  %s29, 16, %s31, [#allocation6]
    $region9: #{tpu_custom_call.1} parent=1 // pred_fallthru
      _
    // Predicated region
    $region10: #{tpu_custom_call.1} parent=1 // pred_check
      _
    $region11: #{tpu_custom_call.1} parent=1 // pred_check_branch
      %35 = sbr.rel (0) target = $region13
    $region12: #{tpu_custom_call.1} parent=1 // pred_region
      %37 = dma.done [#allocation3], 512
    $region13: #{tpu_custom_call.1} parent=1 // pred_fallthru
      _
    // Predicated region
    $region14: #{tpu_custom_call.1} parent=1 // pred_check
      _
    $region15: #{tpu_custom_call.1} parent=1 // pred_check_branch
      %39 = sbr.rel (0) target = $region17
    $region16: #{tpu_custom_call.1} parent=1 // pred_region
      %41 = dma.done [#allocation6], 16
    $region17: #{tpu_custom_call.1} parent=1 // pred_fallthru
      _
    %v42 = vld [vmem:[#allocation2] sm:$0xf]
    %s43 = scalar_lea.vmem [#allocation2], 4
    %v44 = vld [vmem:[%s43] sm:$0xf]
    %v45 = vadd.f32 %v42, %v44
    %s46 = scalar_lea.vmem [#allocation2], 8
    %v47 = vld [vmem:[%s46] sm:$0xf]
    %v48 = vadd.f32 %v45, %v47
    %s49 = scalar_lea.vmem [#allocation2], 12
    %v50 = vld [vmem:[%s49] sm:$0xf]
    %v51 = vadd.f32 %v48, %v50
    %s52 = scalar_lea.vmem [#allocation2], 16
    %v53 = vld [vmem:[%s52] sm:$0xf]
    %v54 = vadd.f32 %v51, %v53
    %s55 = scalar_lea.vmem [#allocation2], 20
    %v56 = vld [vmem:[%s55] sm:$0xf]
    %v57 = vadd.f32 %v54, %v56
    %s58 = scalar_lea.vmem [#allocation2], 24
    %v59 = vld [vmem:[%s58] sm:$0xf]
    %v60 = vadd.f32 %v57, %v59
    %s61 = scalar_lea.vmem [#allocation2], 28
    %v62 = vld [vmem:[%s61] sm:$0xf]
    %v63 = vadd.f32 %v60, %v62
    %v64 = vld [vmem:[#allocation5] sm:$0x1]
    %v65 = vmax.f32 %v64, 1.0
    %v66 = vrcp.pop %v65
    %v67 = vmul.f32 %v65, %v66
    %v68 = vsub.f32 1.0, %v67
    %v69 = vmul.f32 %v66, %v68
    %v70 = vadd.f32 %v66, %v69
    %vm71 = vweird.f32 %v65
    %vm72 = vweird.f32 %v66
    %vm73 = vmor %vm71, %vm72
    %v74 = vsel %vm73, %v66, %v70
    %v75 = vand.u32 2147483647, %v65
    %vm76 = vcmp.eq.f32.partialorder %v75, 8.507059e+37
    %v77 = vand.u32 %v65, 2147483648
    %v78 = vor.u32 1.1754944e-38, %v77
    %v79 = vsel %vm76, %v78, %v74
    %v80 = vmul.f32 1.0, %v79
    %v82 = vperm.slane %v80, 0
    %v84 = vmul.f32 %v63, %v82
    %85 = vst [vmem:[#allocation7] sm:$0xf] %v84
    // Predicated region
    $region18: #{tpu_custom_call.1} parent=1 // pred_check
      _
    $region19: #{tpu_custom_call.1} parent=1 // pred_check_branch
      %87 = sbr.rel (0) target = $region21
    $region20: #{tpu_custom_call.1} parent=1 // pred_region
      %89 = vsyncadd [#allocation4], 0
      %s91 = sshll.u32 [#allocation7], 4
      %s92 = int_to_ptr.vmem [resolvable:$true] %s91
      %s93 = sshll.u32 %s2, 4
      %s94 = int_to_ptr.hbm [resolvable:$true] %s93
      %96 = dma.vmem_to_hbm [thread:$0]  %s92, 64, %s94, [#allocation4]
    $region21: #{tpu_custom_call.1} parent=1 // pred_fallthru
      _
    // Predicated region
    $region22: #{tpu_custom_call.1} parent=1 // pred_check
      _
    $region23: #{tpu_custom_call.1} parent=1 // pred_check_branch
      %98 = sbr.rel (0) target = $region25
    $region24: #{tpu_custom_call.1} parent=1 // pred_region
      %100 = dma.done [#allocation4], 64
    $region25: #{tpu_custom_call.1} parent=1 // pred_fallthru
      _
    %101 = vsyncpa [#allocation3], 1
    %102 = vsyncpa [#allocation6], 1
    %103 = vsyncpa [#allocation4], 1

</llo_original>
